<compile_context>
chip_gen: v5e
topology: v5e:2x2
jax: 0.10.0
libtpu: 0.0.40
codegen_flags: <defaults>
</compile_context>

<pallas_src>
import jax
import jax.numpy as jnp
from jax.experimental import pallas as pl
from jax.experimental.pallas import tpu as pltpu


BLOCK_ROWS = 2048  # rows of 128 lanes per block -> 1 MiB f32 per block


def _autoencoder_kernel(params_ref, x_ref, out_ref):
    # params_ref: SMEM (7,) f32 = [w1_00, w1_01, b1_0, w2_00, w2_10, b2_0, b2_1]
    # x_ref/out_ref: VMEM (BR, 128); lanes alternate feature0, feature1 of each sample.
    w10 = params_ref[0]
    w11 = params_ref[1]
    b1 = params_ref[2]
    w20 = params_ref[3]
    w21 = params_ref[4]
    b20 = params_ref[5]
    b21 = params_ref[6]

    x = x_ref[...].astype(jnp.float32)                 # (BR, 128), sublane-dense
    c = x.shape[-1]                                    # 128 lanes
    lane = jax.lax.broadcasted_iota(jnp.int32, (1, c), 1)
    even = (lane % 2) == 0                             # (1, 128): True on feature-0 lanes

    # fc1: per-lane contribution of the lane's own feature, then add the partner lane's
    # contribution via static lane rotations (XLU slot — free under the HBM roofline).
    # A sample's two lanes never straddle the 128-lane boundary, so the wrapped lanes of
    # each roll are never selected.
    contrib = jnp.where(even, w10, w11) * x                      # w1[f] * p[f] per lane
    partner = jnp.where(
        even,
        pltpu.roll(contrib, c - 1, 1),                           # lane i <- lane i+1
        pltpu.roll(contrib, 1, 1),                               # lane i <- lane i-1
    )
    a = jax.nn.sigmoid(contrib + partner + b1)                   # EUP; equal on both pair lanes

    # fc2: scalar-weight FMA with lane-parity weights/biases; lane- & sublane-dense store.
    out = a * jnp.where(even, w20, w21) + jnp.where(even, b20, b21)
    out_ref[...] = out.astype(out_ref.dtype)


def autoencoder_forward(p, w1, b1, w2, b2, *, block_rows=BLOCK_ROWS):
    """p: (N, 2). w1: (1, 2), b1: (1,), w2: (2, 1), b2: (2,) — PyTorch layouts."""
    assert p.ndim == 2 and p.shape[1] == 2
    assert block_rows % 8 == 0
    n = p.shape[0]
    n_elems = 2 * n

    # Pack all weights/biases into one small SMEM-resident scalar array.
    params = jnp.concatenate(
        [w1.reshape(-1), b1.reshape(-1), w2.reshape(-1), b2.reshape(-1)]
    ).astype(jnp.float32)                                        # (7,)

    # Contiguous (free) relayout: row-major (N, 2) -> (rows, 128) with features
    # interleaved on lanes.  Flat pad (one pass, only when needed) to whole blocks.
    rows = pl.cdiv(n_elems, 128)
    br = min(block_rows, pl.cdiv(rows, 8) * 8)                   # block rows (multiple of 8)
    rows_padded = pl.cdiv(rows, br) * br
    flat = p.reshape(-1)
    pad = rows_padded * 128 - n_elems
    if pad:
        flat = jnp.pad(flat, (0, pad))
    x2d = flat.reshape(rows_padded, 128)

    out2d = pl.pallas_call(
        _autoencoder_kernel,
        out_shape=jax.ShapeDtypeStruct((rows_padded, 128), p.dtype),
        grid=(rows_padded // br,),
        in_specs=[
            pl.BlockSpec(memory_space=pltpu.MemorySpace.SMEM),   # params: whole array in SMEM
            pl.BlockSpec((br, 128), lambda i: (i, 0)),           # input block (interleaved)
        ],
        out_specs=pl.BlockSpec((br, 128), lambda i: (i, 0)),
        compiler_params=pltpu.CompilerParams(
            dimension_semantics=("parallel",),
            vmem_limit_bytes=32 * 1024 * 1024,
        ),
    )(params, x2d)

    # Contiguous slice/reshape back to the PyTorch layout (padded lanes discarded).
    return out2d.reshape(-1)[:n_elems].reshape(n, 2)


def _init_params(key):
    """Deterministic init mimicking PyTorch Linear default (U(-1/sqrt(fan_in), +))."""
    k1, k2, k3, k4 = jax.random.split(key, 4)
    bound1 = 1.0 / jnp.sqrt(2.0)   # fc1 fan_in = 2
    bound2 = 1.0                   # fc2 fan_in = 1
    w1 = jax.random.uniform(k1, (1, 2), jnp.float32, -bound1, bound1)
    b1 = jax.random.uniform(k2, (1,), jnp.float32, -bound1, bound1)
    w2 = jax.random.uniform(k3, (2, 1), jnp.float32, -bound2, bound2)
    b2 = jax.random.uniform(k4, (2,), jnp.float32, -bound2, bound2)
    return w1, b1, w2, b2


def _reference(p, w1, b1, w2, b2):
    a = jax.nn.sigmoid(p @ w1.T + b1)
    return a @ w2.T + b2


if __name__ == "__main__":
    key = jax.random.PRNGKey(0)
    kp, kw, kp2 = jax.random.split(key, 3)
    w1, b1, w2, b2 = _init_params(kw)

    # Small batch consistent with the module's (N, 2) input.
    N = 8
    p = jax.random.normal(kp, (N, 2), jnp.float32)
    out = jax.block_until_ready(autoencoder_forward(p, w1, b1, w2, b2))
    ref = _reference(p, w1, b1, w2, b2)
    assert out.shape == (N, 2)
    assert jnp.allclose(out, ref, atol=1e-5, rtol=1e-5)

    # Padded, multi-row batch (single large block).
    N2 = 1100
    p2 = jax.random.normal(kp2, (N2, 2), jnp.float32)
    out2 = jax.block_until_ready(autoencoder_forward(p2, w1, b1, w2, b2))
    ref2 = _reference(p2, w1, b1, w2, b2)
    assert out2.shape == (N2, 2)
    assert jnp.allclose(out2, ref2, atol=1e-5, rtol=1e-5)

    # Force a multi-block grid (exercises the pipelined path) with a small block override.
    out3 = jax.block_until_ready(
        autoencoder_forward(p2, w1, b1, w2, b2, block_rows=8))
    assert jnp.allclose(out3, ref2, atol=1e-5, rtol=1e-5)

    print("KERNEL_OK")
</pallas_src>

<mosaic_0001>
module attributes {stable_mosaic.version = 11 : i64} {
  func.func @_autoencoder_kernel(%arg0: i32, %arg1: memref<7xf32, #tpu.memory_space<smem>>, %arg2: memref<8x128xf32, #tpu.memory_space<vmem>>, %arg3: memref<8x128xf32, #tpu.memory_space<vmem>>) attributes {dimension_semantics = [#tpu.dimension_semantics<parallel>], iteration_bounds = array<i64: 1>, scalar_prefetch = 0 : i64, scratch_operands = 0 : i64, tpu.core_type = #tpu.core_type<tc>, window_params = [{transform_indices = @transform_0, window_bounds = array<i64: 7>}, {transform_indices = @transform_1, window_bounds = array<i64: 8, 128>}, {transform_indices = @transform_2, window_bounds = array<i64: 8, 128>}]} {
    %c0 = arith.constant 0 : index
    %0 = memref.load %arg1[%c0] : memref<7xf32, #tpu.memory_space<smem>>
    %c1 = arith.constant 1 : index
    %1 = memref.load %arg1[%c1] : memref<7xf32, #tpu.memory_space<smem>>
    %c2 = arith.constant 2 : index
    %2 = memref.load %arg1[%c2] : memref<7xf32, #tpu.memory_space<smem>>
    %c3 = arith.constant 3 : index
    %3 = memref.load %arg1[%c3] : memref<7xf32, #tpu.memory_space<smem>>
    %c4 = arith.constant 4 : index
    %4 = memref.load %arg1[%c4] : memref<7xf32, #tpu.memory_space<smem>>
    %c5 = arith.constant 5 : index
    %5 = memref.load %arg1[%c5] : memref<7xf32, #tpu.memory_space<smem>>
    %c6 = arith.constant 6 : index
    %6 = memref.load %arg1[%c6] : memref<7xf32, #tpu.memory_space<smem>>
    %c0_0 = arith.constant 0 : index
    %c0_1 = arith.constant 0 : index
    %7 = vector.load %arg2[%c0_0, %c0_1] : memref<8x128xf32, #tpu.memory_space<vmem>>, vector<8x128xf32>
    %8 = tpu.iota {dimensions = array<i32: 1>} : vector<1x128xi32>
    %c2_i32 = arith.constant 2 : i32
    %c0_i32 = arith.constant 0 : i32
    %9 = arith.cmpi eq, %c2_i32, %c0_i32 : i32
    %c1_i32 = arith.constant 1 : i32
    %10 = arith.select %9, %c1_i32, %c2_i32 : i32
    %11 = vector.broadcast %10 : i32 to vector<1x128xi32>
    %12 = arith.remsi %8, %11 : vector<1x128xi32>
    %c0_i32_2 = arith.constant 0 : i32
    %13 = vector.broadcast %c0_i32_2 : i32 to vector<1x128xi32>
    %14 = arith.cmpi ne, %12, %13 : vector<1x128xi32>
    %c0_i32_3 = arith.constant 0 : i32
    %15 = vector.broadcast %c0_i32_3 : i32 to vector<1x128xi32>
    %16 = arith.cmpi slt, %12, %15 : vector<1x128xi32>
    %c0_i32_4 = arith.constant 0 : i32
    %17 = arith.cmpi slt, %10, %c0_i32_4 : i32
    %18 = vector.broadcast %17 : i1 to vector<1x128xi1>
    %19 = vector.broadcast %18 : vector<1x128xi1> to vector<1x128xi1>
    %20 = arith.xori %16, %19 : vector<1x128xi1>
    %21 = arith.andi %20, %14 : vector<1x128xi1>
    %22 = vector.broadcast %10 : i32 to vector<1x128xi32>
    %23 = arith.addi %12, %22 : vector<1x128xi32>
    %24 = arith.select %21, %23, %12 : vector<1x128xi1>, vector<1x128xi32>
    %c0_i32_5 = arith.constant 0 : i32
    %25 = vector.broadcast %c0_i32_5 : i32 to vector<1x128xi32>
    %26 = arith.cmpi eq, %24, %25 : vector<1x128xi32>
    %27 = vector.broadcast %0 : f32 to vector<1x128xf32>
    %28 = vector.broadcast %1 : f32 to vector<1x128xf32>
    %29 = arith.select %26, %27, %28 : vector<1x128xi1>, vector<1x128xf32>
    %30 = vector.broadcast %29 : vector<1x128xf32> to vector<8x128xf32>
    %31 = arith.mulf %30, %7 : vector<8x128xf32>
    %c127_i32 = arith.constant 127 : i32
    %32 = tpu.dynamic_rotate %31 by %c127_i32 dim 1 : vector<8x128xf32>, i32 -> vector<8x128xf32>
    %c1_i32_6 = arith.constant 1 : i32
    %33 = tpu.dynamic_rotate %31 by %c1_i32_6 dim 1 : vector<8x128xf32>, i32 -> vector<8x128xf32>
    %34 = vector.shape_cast %26 : vector<1x128xi1> to vector<1x128xi1>
    %35 = vector.broadcast %34 : vector<1x128xi1> to vector<8x128xi1>
    %36 = arith.select %35, %32, %33 : vector<8x128xi1>, vector<8x128xf32>
    %37 = arith.addf %31, %36 : vector<8x128xf32>
    %38 = vector.broadcast %2 : f32 to vector<8x128xf32>
    %39 = arith.addf %37, %38 : vector<8x128xf32>
    %40 = arith.negf %39 : vector<8x128xf32>
    %41 = math.exp %40 : vector<8x128xf32>
    %cst = arith.constant 1.000000e+00 : f32
    %42 = vector.broadcast %cst : f32 to vector<8x128xf32>
    %43 = arith.addf %42, %41 : vector<8x128xf32>
    %44 = arith.divf %42, %43 : vector<8x128xf32>
    %45 = vector.broadcast %3 : f32 to vector<1x128xf32>
    %46 = vector.broadcast %4 : f32 to vector<1x128xf32>
    %47 = arith.select %26, %45, %46 : vector<1x128xi1>, vector<1x128xf32>
    %48 = vector.broadcast %47 : vector<1x128xf32> to vector<8x128xf32>
    %49 = arith.mulf %44, %48 : vector<8x128xf32>
    %50 = vector.broadcast %5 : f32 to vector<1x128xf32>
    %51 = vector.broadcast %6 : f32 to vector<1x128xf32>
    %52 = arith.select %26, %50, %51 : vector<1x128xi1>, vector<1x128xf32>
    %53 = vector.broadcast %52 : vector<1x128xf32> to vector<8x128xf32>
    %54 = arith.addf %49, %53 : vector<8x128xf32>
    %c0_7 = arith.constant 0 : index
    %c0_8 = arith.constant 0 : index
    %55 = vector.load %arg3[%c0_7, %c0_8] : memref<8x128xf32, #tpu.memory_space<vmem>>, vector<8x128xf32>
    tpu.vector_store %arg3[%c0_7, %c0_8], %54 {strides = array<i32>} : memref<8x128xf32, #tpu.memory_space<vmem>>, vector<8x128xf32>,
    return
  }
  func.func @transform_0(%arg0: i32) -> i32 {
    %c0_i32 = arith.constant 0 : i32
    %c0_i32_0 = arith.constant 0 : i32
    return %c0_i32 : i32
  }
  func.func @transform_1(%arg0: i32) -> (i32, i32) {
    %c0_i32 = arith.constant 0 : i32
    %c0_i32_0 = arith.constant 0 : i32
    return %arg0, %c0_i32 : i32, i32
  }
  func.func @transform_2(%arg0: i32) -> (i32, i32) {
    %c0_i32 = arith.constant 0 : i32
    %c0_i32_0 = arith.constant 0 : i32
    return %arg0, %c0_i32 : i32, i32
  }
}

</mosaic_0001>

<llo_original>
// kernel: tpu_custom_call.1
$region0: #{tpu_custom_call.1}
  #allocation0 [shape = 'u32[]', space=smem, size = 0x4, offset = 0x4, fixed_abs, tag = 'smem constant byte address 0x4 - core index']
  #allocation1 [shape = 'u32[72,128]{1,0:T(1,128)}', space=vmem, size = 0x9000, scoped, tag = 'internal scratch']
  %s0 = inlined_call_operand.hbm [shape: f32[7], index: 0, kind: input, shape index: {}]
  %s1 = inlined_call_operand.hbm [shape: f32[8,128], index: 1, kind: input, shape index: {}]
  %s2 = inlined_call_operand.hbm [shape: f32[8,128], index: 2, kind: output, shape index: {}]
  %s3 = sld [smem:[#allocation0]]
  $region26: #{tpu_custom_call.1} parent=0
    _
  %s5 = ssub.s32 1, %s3
  %s6 = scalar_select 0, %s5, %s3
  $region1: #{tpu_custom_call.1} parent=0
    #allocation2 [shape = 'u8[512]{0}', space=smem, size = 0x200, scoped, tag = 'input window, operand 0, single buffered']
    #allocation3 [shape = 's32[1]{0}', space=sflag, size = 0x4, scoped, tag = 'scoped memory for tpu_custom_call.1']
    #allocation4 [shape = 's32[1]{0}', space=sflag, size = 0x4, scoped, tag = 'scoped memory for tpu_custom_call.1']
    #allocation5 [shape = 's32[1]{0}', space=sflag, size = 0x4, scoped, tag = 'scoped memory for tpu_custom_call.1']
    #allocation6 [shape = 'u8[4096]{0}', space=vmem, size = 0x1000, scoped, tag = 'input window, operand 1, single buffered']
    #allocation7 [shape = 'u8[4096]{0}', space=vmem, size = 0x1000, scoped, tag = 'output window, operand 0, single buffered']
    %7 = vsyncpa [#allocation5], 0
    %8 = vsyncpa [#allocation3], 0
    %9 = vsyncpa [#allocation4], 0
    // Predicated region
    $region2: #{tpu_custom_call.1} parent=1 // pred_check
      _
    $region3: #{tpu_custom_call.1} parent=1 // pred_check_branch
      %11 = sbr.rel (0) target = $region5
    $region4: #{tpu_custom_call.1} parent=1 // pred_region
      %13 = vsyncadd [#allocation5], 0
      %s15 = sshll.u32 %s0, 4
      %s16 = int_to_ptr.hbm [resolvable:$true] %s15
      %18 = dma.hbm_to_smem %s16, 16, [#allocation2], [#allocation5]
    $region5: #{tpu_custom_call.1} parent=1 // pred_fallthru
      _
    // Predicated region
    $region6: #{tpu_custom_call.1} parent=1 // pred_check
      _
    $region7: #{tpu_custom_call.1} parent=1 // pred_check_branch
      %20 = sbr.rel (0) target = $region9
    $region8: #{tpu_custom_call.1} parent=1 // pred_region
      %22 = vsyncadd [#allocation3], 0
      %s24 = sshll.u32 %s1, 4
      %s25 = int_to_ptr.hbm [resolvable:$true] %s24
      %s26 = sshll.u32 [#allocation6], 4
      %s27 = int_to_ptr.vmem [resolvable:$true] %s26
      %29 = dma.hbm_to_vmem [thread:$0]  %s25, 128, %s27, [#allocation3]
    $region9: #{tpu_custom_call.1} parent=1 // pred_fallthru
      _
    // Predicated region
    $region10: #{tpu_custom_call.1} parent=1 // pred_check
      _
    $region11: #{tpu_custom_call.1} parent=1 // pred_check_branch
      %31 = sbr.rel (0) target = $region13
    $region12: #{tpu_custom_call.1} parent=1 // pred_region
      %33 = dma.done [#allocation5], 16
    $region13: #{tpu_custom_call.1} parent=1 // pred_fallthru
      _
    // Predicated region
    $region14: #{tpu_custom_call.1} parent=1 // pred_check
      _
    $region15: #{tpu_custom_call.1} parent=1 // pred_check_branch
      %35 = sbr.rel (0) target = $region17
    $region16: #{tpu_custom_call.1} parent=1 // pred_region
      %37 = dma.done [#allocation3], 128
    $region17: #{tpu_custom_call.1} parent=1 // pred_fallthru
      _
    %38 = sfence
    %s39 = sld [smem:[#allocation2]]
    %s40 = sld [smem:[#allocation2 + $0x1]]
    %s41 = sld [smem:[#allocation2 + $0x2]]
    %s42 = sld [smem:[#allocation2 + $0x3]]
    %s43 = sld [smem:[#allocation2 + $0x4]]
    %s44 = sld [smem:[#allocation2 + $0x5]]
    %s45 = sld [smem:[#allocation2 + $0x6]]
    %v46 = vld [vmem:[#allocation6] sm:$0xff]
    %v47 = vlaneseq
    %v48 = vand.u32 %v47, 127
    %vm49 = vcmp.lt.s32.totalorder %v48, 0
    %v50 = vsub.s32 0, %v48
    %v51 = vsel %vm49, %v50, %v48
    %v52 = vshrl.u32 %v51, 1
    %v53 = vand.u32 %v51, 1
    %v54 = vsub.s32 0, %v53
    %v55 = vsel %vm49, %v54, %v53
    %vm56 = vcmp.ne.s32.totalorder %v55, 0
    %vm57 = vcmp.lt.s32.totalorder %v55, 0
    %vm58 = vmand %vm57, %vm56
    %v59 = vadd.s32 %v55, 2
    %v60 = vsel %vm58, %v59, %v55
    %vm61 = vcmp.eq.s32.totalorder %v60, 0
    %v62 = vstv %s39
    %v63 = vstv %s40
    %v64 = vsel %vm61, %v62, %v63
    %v65 = vmul.f32 %v64, %v46
    %66 = vrot.lane.b32.xlu0 %v65, 127
    %v67 = vpop.permute.xlu0 %66
    %68 = vrot.lane.b32.xlu0 %v65, 1
    %v69 = vpop.permute.xlu0 %68
    %v70 = vsel %vm61, 1, 0
    %vm71 = vcmp.eq.s32.totalorder %v70, 1
    %v72 = vsel %vm71, %v67, %v69
    %v73 = vadd.f32 %v65, %v72
    %v74 = vstv %s41
    %v75 = vadd.f32 %v73, %v74
    %v76 = vxor.u32 %v75, 2147483648
    %v77 = vmul.f32 %v76, 1.442695
    %v78 = vpow.pop %v77
    %v79 = vadd.f32 %v78, 1.0
    %v80 = vrcp.pop %v79
    %v81 = vmul.f32 %v79, %v80
    %v82 = vsub.f32 1.0, %v81
    %v83 = vmul.f32 %v80, %v82
    %v84 = vadd.f32 %v80, %v83
    %vm85 = vweird.f32 %v79
    %vm86 = vweird.f32 %v80
    %vm87 = vmor %vm85, %vm86
    %v88 = vsel %vm87, %v80, %v84
    %v89 = vand.u32 2147483647, %v79
    %vm90 = vcmp.eq.f32.partialorder %v89, 8.507059e+37
    %v91 = vand.u32 %v79, 2147483648
    %v92 = vor.u32 1.1754944e-38, %v91
    %v93 = vsel %vm90, %v92, %v88
    %v94 = vmul.f32 1.0, %v93
    %v95 = vstv %s42
    %v96 = vstv %s43
    %v97 = vsel %vm61, %v95, %v96
    %v98 = vmul.f32 %v94, %v97
    %v99 = vstv %s44
    %v100 = vstv %s45
    %v101 = vsel %vm61, %v99, %v100
    %v102 = vadd.f32 %v98, %v101
    %103 = vst [vmem:[#allocation7] sm:$0xff] %v102
    // Predicated region
    $region18: #{tpu_custom_call.1} parent=1 // pred_check
      _
    $region19: #{tpu_custom_call.1} parent=1 // pred_check_branch
      %105 = sbr.rel (0) target = $region21
    $region20: #{tpu_custom_call.1} parent=1 // pred_region
      %107 = vsyncadd [#allocation4], 0
      %s109 = sshll.u32 [#allocation7], 4
      %s110 = int_to_ptr.vmem [resolvable:$true] %s109
      %s111 = sshll.u32 %s2, 4
      %s112 = int_to_ptr.hbm [resolvable:$true] %s111
      %114 = dma.vmem_to_hbm [thread:$0]  %s110, 128, %s112, [#allocation4]
    $region21: #{tpu_custom_call.1} parent=1 // pred_fallthru
      _
    // Predicated region
    $region22: #{tpu_custom_call.1} parent=1 // pred_check
      _
    $region23: #{tpu_custom_call.1} parent=1 // pred_check_branch
      %116 = sbr.rel (0) target = $region25
    $region24: #{tpu_custom_call.1} parent=1 // pred_region
      %118 = dma.done [#allocation4], 128
    $region25: #{tpu_custom_call.1} parent=1 // pred_fallthru
      _
    %119 = vsyncpa [#allocation3], 1
    %120 = vsyncpa [#allocation4], 1
    %121 = vsyncpa [#allocation5], 1

</llo_original>
